<compile_context>
chip_gen: v5e
topology: v5e:2x2
jax: 0.10.0
libtpu: 0.0.40
codegen_flags: <defaults>
</compile_context>

<pallas_src>
import functools
import math

import jax
import jax.numpy as jnp
from jax import lax
from jax.experimental import pallas as pl
from jax.experimental.pallas import tpu as pltpu

_BN_EPS = 1e-5
_LRELU_SLOPE = 0.01          # PyTorch nn.LeakyReLU default negative_slope


def _round_up(x: int, m: int) -> int:
    return ((x + m - 1) // m) * m


def _pick_tk(h: int) -> int:
    """Contraction-tile width for the streamed H x H weights (128-multiple, >=2 tiles)."""
    for tk in (512, 256, 128):
        if h % tk == 0 and h // tk >= 2:
            return tk
    return h


# ---------------------------------------------------------------------------
# Fused kernel: all BasicBlocks + final Linear in one pallas_call.
# ---------------------------------------------------------------------------
def _fused_mlp_kernel(x_ref, w0_ref, b0_ref, w_ref, b_all_ref, wf_ref, bf_ref,
                      o_ref, act_ref, acc_ref):
    """
    Grid = (Lh, KT).

    x_ref     : (B_pad, K0_pad)   f32  padded network input           (resident)
    w0_ref    : (K0_pad, H)       bf16 layer-0 BN-folded weight       (resident)
    b0_ref    : (1, H)            f32  layer-0 folded bias            (resident)
    w_ref     : (1, TK, H)        bf16 streamed H x H weight K-tile   (pipelined)
    b_all_ref : (Lh, 1, H)        f32  all H x H folded biases        (resident)
    wf_ref    : (H, N_pad)        bf16 final Linear weight            (resident)
    bf_ref    : (1, N_pad)        f32  final Linear bias              (resident)
    o_ref     : (B_pad, N_pad)    f32  output                         (resident)
    act_ref   : (2*KT, B_pad, TK) bf16 ping-pong activations (slot*KT + chunk)
    acc_ref   : (B_pad, H)        f32  per-layer matmul accumulator
    """
    l = pl.program_id(0)
    k = pl.program_id(1)
    n_l = pl.num_programs(0)
    n_k = pl.num_programs(1)

    kt = act_ref.shape[0] // 2          # number of contraction chunks (static)
    tk = act_ref.shape[2]               # chunk width (static)

    # ---- layer 0 (input -> H): once, before the first H x H tile ------------
    @pl.when((l == 0) & (k == 0))
    def _layer0():
        y0 = jnp.dot(x_ref[...].astype(jnp.bfloat16), w0_ref[...],
                     preferred_element_type=jnp.float32) + b0_ref[...]
        y0 = jnp.where(y0 >= 0.0, y0, _LRELU_SLOPE * y0)      # LeakyReLU
        y0 = y0.astype(jnp.bfloat16)                          # Dropout: identity (eval)
        for j in range(kt):                                   # seed ping-pong slot 0
            act_ref[j] = y0[:, j * tk:(j + 1) * tk]

    # ---- H x H BasicBlock l, contraction tile k ------------------------------
    @pl.when(k == 0)
    def _zero_acc():
        acc_ref[...] = jnp.zeros_like(acc_ref)

    a = act_ref[(l % 2) * kt + k]                             # (B_pad, TK) bf16
    acc_ref[...] += jnp.dot(a, w_ref[0], preferred_element_type=jnp.float32)

    # ---- layer epilogue: bias + LeakyReLU; ping-pong or fused final Linear ---
    @pl.when(k == n_k - 1)
    def _epilogue():
        y = acc_ref[...] + b_all_ref[l]                       # (B_pad, H) f32
        y = jnp.where(y >= 0.0, y, _LRELU_SLOPE * y)          # LeakyReLU
        yb = y.astype(jnp.bfloat16)                           # Dropout: identity (eval)

        @pl.when(l < n_l - 1)
        def _store_next_input():
            base = ((l + 1) % 2) * kt
            for j in range(kt):
                act_ref[base + j] = yb[:, j * tk:(j + 1) * tk]

        @pl.when(l == n_l - 1)
        def _final_linear():
            o_ref[...] = (jnp.dot(yb, wf_ref[...],
                                  preferred_element_type=jnp.float32)
                          + bf_ref[...])


# ---------------------------------------------------------------------------
# Wrapper
# ---------------------------------------------------------------------------
@functools.partial(jax.jit, static_argnames=("output_dim",))
def classifier_forward(packed, x, *, output_dim):
    """Pallas forward pass.  `packed` comes from pack_inference_params()."""
    w0 = packed["w0"]            # (K0_pad, H)  bf16
    b0 = packed["b0"]            # (1, H)       f32
    w_all = packed["w_all"]      # (Lh, H, H)   bf16
    b_all = packed["b_all"]      # (Lh, 1, H)   f32
    wf = packed["w_final"]       # (H, N_pad)   bf16
    bf = packed["b_final"]       # (1, N_pad)   f32

    Lh, H, _ = w_all.shape
    K0_pad = w0.shape[0]
    N_pad = wf.shape[1]
    batch, in_dim = x.shape
    B_pad = _round_up(max(batch, 16), 16)       # bf16 sublane pack = 16 rows

    TK = _pick_tk(H)
    KT = H // TK

    # Zero-pad input: extra rows / columns meet zero-padded layer-0 weight rows.
    x_pad = jnp.zeros((B_pad, K0_pad), jnp.float32)
    x_pad = x_pad.at[:batch, :in_dim].set(x.astype(jnp.float32))

    # VMEM budget: streamed-weight double buffer + resident tensors + scratch.
    est = (B_pad * K0_pad * 4            # x (resident)
           + K0_pad * H * 2              # layer-0 weight (resident)
           + 2 * TK * H * 2              # streamed H x H weight double buffer
           + (Lh + 1) * H * 4            # folded biases
           + H * N_pad * 2 + N_pad * 4   # final weight / bias (resident)
           + 2 * B_pad * H * 2           # bf16 ping-pong activations
           + B_pad * H * 4               # f32 accumulator
           + B_pad * N_pad * 4           # resident output
           + (2 << 20))                  # slack / internal scratch
    vmem_limit = int(min(max(est, 32 * 1024 * 1024), 48 * 1024 * 1024))

    flops = 2 * B_pad * (K0_pad * H + Lh * H * H + H * N_pad)
    bytes_accessed = (B_pad * K0_pad * 4 + K0_pad * H * 2 + H * 4
                      + Lh * H * H * 2 + Lh * H * 4
                      + H * N_pad * 2 + N_pad * 4 + B_pad * N_pad * 4)

    out_pad = pl.pallas_call(
        _fused_mlp_kernel,
        out_shape=jax.ShapeDtypeStruct((B_pad, N_pad), jnp.float32),
        grid=(Lh, KT),
        in_specs=[
            pl.BlockSpec((B_pad, K0_pad), lambda l, k: (0, 0)),     # x: resident
            pl.BlockSpec((K0_pad, H),     lambda l, k: (0, 0)),     # w0: resident
            pl.BlockSpec((1, H),          lambda l, k: (0, 0)),     # b0: resident
            pl.BlockSpec((1, TK, H),      lambda l, k: (l, k, 0)),  # HxH weights: streamed
            pl.BlockSpec((Lh, 1, H),      lambda l, k: (0, 0, 0)),  # biases: resident
            pl.BlockSpec((H, N_pad),      lambda l, k: (0, 0)),     # final W: resident
            pl.BlockSpec((1, N_pad),      lambda l, k: (0, 0)),     # final b: resident
        ],
        out_specs=pl.BlockSpec((B_pad, N_pad), lambda l, k: (0, 0)),
        scratch_shapes=[
            pltpu.VMEM((2 * KT, B_pad, TK), jnp.bfloat16),          # ping-pong acts
            pltpu.VMEM((B_pad, H), jnp.float32),                    # layer accumulator
        ],
        compiler_params=pltpu.CompilerParams(
            dimension_semantics=("arbitrary", "arbitrary"),  # sequentially dependent
            vmem_limit_bytes=vmem_limit,
        ),
        cost_estimate=pl.CostEstimate(flops=flops, transcendentals=0,
                                      bytes_accessed=bytes_accessed),
    )(x_pad, w0, b0, w_all, b_all, wf, bf)

    return out_pad[:batch, :output_dim]


# ---------------------------------------------------------------------------
# Parameter construction (deterministic, PyTorch-style layout)
# ---------------------------------------------------------------------------
def make_classifier_params(key, input_dim, output_dim, hidden_layers, hidden_dim):
    """Raw PyTorch-layout parameters (Linear weights stored (out, in))."""
    dims = [input_dim] + [hidden_dim] * (hidden_layers + 1)
    blocks = []
    for i in range(hidden_layers + 1):
        k = jax.random.fold_in(key, i)
        kw, kb, kg, kbeta, km, kv = jax.random.split(k, 6)
        bound = 1.0 / math.sqrt(dims[i])
        blocks.append(dict(
            w=jax.random.uniform(kw, (dims[i + 1], dims[i]), jnp.float32, -bound, bound),
            b=jax.random.uniform(kb, (dims[i + 1],), jnp.float32, -bound, bound),
            gamma=1.0 + 0.1 * jax.random.normal(kg, (dims[i + 1],), jnp.float32),
            beta=0.1 * jax.random.normal(kbeta, (dims[i + 1],), jnp.float32),
            mean=0.1 * jax.random.normal(km, (dims[i + 1],), jnp.float32),
            var=1.0 + 0.1 * jnp.abs(jax.random.normal(kv, (dims[i + 1],), jnp.float32)),
        ))
    kf = jax.random.fold_in(key, 10_000)
    kw, kb = jax.random.split(kf)
    bound = 1.0 / math.sqrt(hidden_dim)
    w_fin = jax.random.uniform(kw, (output_dim, hidden_dim), jnp.float32, -bound, bound)
    b_fin = jax.random.uniform(kb, (output_dim,), jnp.float32, -bound, bound)
    return dict(blocks=blocks, final=(w_fin, b_fin))


def pack_inference_params(params, input_dim, hidden_dim):
    """Fold BatchNorm(eval) into each Linear, transpose to (in, out), cast to bf16.

    Layer 0 is padded only to round_up(input_dim, 128) rows (kept resident by the
    kernel); the H x H layers are stacked unpadded for streaming.
    Returns (packed_kernel_params, folded_reference_params)."""
    blocks = params["blocks"]
    assert len(blocks) >= 2, "kernel requires hidden_layers >= 1"  # TODO(synk): hidden_layers == 0 path
    H = hidden_dim
    K0_pad = _round_up(input_dim, 128)

    def fold(blk):
        scale = blk["gamma"] * lax.rsqrt(blk["var"] + _BN_EPS)        # (out,)
        w_fold = blk["w"].T * scale[None, :]                          # (in, out)
        b_fold = (blk["b"] - blk["mean"]) * scale + blk["beta"]       # (out,)
        return w_fold, b_fold

    # Layer 0 (input -> H): zero-pad rows to K0_pad.
    w0_f, b0_f = fold(blocks[0])
    w0_pad = jnp.zeros((K0_pad, H), jnp.float32).at[:input_dim, :].set(w0_f)

    # H x H BasicBlocks.
    ref_blocks = [(w0_f.astype(jnp.bfloat16), b0_f)]
    w_list, b_list = [], []
    for blk in blocks[1:]:
        w_f, b_f = fold(blk)
        ref_blocks.append((w_f.astype(jnp.bfloat16), b_f))
        w_list.append(w_f)
        b_list.append(b_f)

    # Final Linear: lane-dense padded output columns.
    w_fin, b_fin = params["final"]
    out_dim = w_fin.shape[0]
    n_pad = _round_up(out_dim, 128)
    w_fin_t = w_fin.T                                                 # (H, out)
    w_fin_pad = jnp.zeros((H, n_pad), jnp.float32).at[:, :out_dim].set(w_fin_t)
    b_fin_pad = jnp.zeros((1, n_pad), jnp.float32).at[0, :out_dim].set(b_fin)

    packed = dict(
        w0=w0_pad.astype(jnp.bfloat16),                   # (K0_pad, H)  bf16
        b0=b0_f[None, :],                                 # (1, H)       f32
        w_all=jnp.stack(w_list).astype(jnp.bfloat16),     # (Lh, H, H)   bf16
        b_all=jnp.stack(b_list)[:, None, :],              # (Lh, 1, H)   f32
        w_final=w_fin_pad.astype(jnp.bfloat16),           # (H, n_pad)   bf16
        b_final=b_fin_pad,                                # (1, n_pad)   f32
    )
    folded_ref = dict(blocks=ref_blocks,
                      final=(w_fin_t.astype(jnp.bfloat16), b_fin))
    return packed, folded_ref


# ---------------------------------------------------------------------------
# Pure-JAX references
# ---------------------------------------------------------------------------
def classifier_forward_fp32_ref(params, x):
    """Full-precision reference == PyTorch Classifier01 in eval mode."""
    h = x
    for blk in params["blocks"]:
        y = h @ blk["w"].T + blk["b"]
        y = (y - blk["mean"]) * lax.rsqrt(blk["var"] + _BN_EPS) * blk["gamma"] + blk["beta"]
        h = jnp.where(y >= 0, y, _LRELU_SLOPE * y)        # Dropout: identity (eval)
    w_fin, b_fin = params["final"]
    return h @ w_fin.T + b_fin


def classifier_forward_folded_ref(folded_ref, x):
    """Reference using the same BN-folded bf16 weights as the kernel."""
    h = x.astype(jnp.float32)
    for w, b in folded_ref["blocks"]:
        y = jnp.dot(h.astype(jnp.bfloat16), w, preferred_element_type=jnp.float32) + b
        h = jnp.where(y >= 0, y, _LRELU_SLOPE * y)
    w, b = folded_ref["final"]
    return jnp.dot(h.astype(jnp.bfloat16), w, preferred_element_type=jnp.float32) + b


# ---------------------------------------------------------------------------
if __name__ == "__main__":
    # Small shapes consistent with Classifier01(input_dim=429, output_dim=39,
    # hidden_layers=5, hidden_dim=2048), scaled down for the demo.
    batch = 8
    input_dim = 100
    output_dim = 40
    hidden_layers = 2          # -> 3 BasicBlocks + final Linear
    hidden_dim = 256           # -> TK=128, KT=2: exercises the K-tiled path

    key = jax.random.PRNGKey(0)
    kx, kp = jax.random.split(key)
    x = jax.random.normal(kx, (batch, input_dim), jnp.float32)

    params = make_classifier_params(kp, input_dim, output_dim, hidden_layers,
                                    hidden_dim)
    packed, folded_ref = pack_inference_params(params, input_dim, hidden_dim)

    out = classifier_forward(packed, x, output_dim=output_dim)
    out = jax.block_until_ready(out)
    assert out.shape == (batch, output_dim)

    # (1) Tight check against identical BN-folded / bf16 math (validates the
    #     Pallas kernel itself; tolerance covers chunked f32 accumulation order).
    ref_bf16 = classifier_forward_folded_ref(folded_ref, x)
    assert jnp.allclose(out, ref_bf16, atol=5e-3, rtol=5e-3), \
        "mismatch vs BN-folded bf16 reference"

    # (2) Loose check against the full-precision eval-mode module (bounds the
    #     bf16 weight/activation quantization error).
    ref_fp32 = classifier_forward_fp32_ref(params, x)
    assert jnp.allclose(out, ref_fp32, atol=5e-2, rtol=5e-2), \
        "mismatch vs fp32 reference"

    print("KERNEL_OK")
</pallas_src>

<mosaic_0001>
module attributes {stable_mosaic.version = 11 : i64} {
  func.func @_fused_mlp_kernel(%arg0: i32, %arg1: i32, %arg2: memref<16x128xf32, #tpu.memory_space<vmem>>, %arg3: memref<128x256xbf16, #tpu.memory_space<vmem>>, %arg4: memref<1x256xf32, #tpu.memory_space<vmem>>, %arg5: memref<1x128x256xbf16, #tpu.memory_space<vmem>>, %arg6: memref<2x1x256xf32, #tpu.memory_space<vmem>>, %arg7: memref<256x128xbf16, #tpu.memory_space<vmem>>, %arg8: memref<1x128xf32, #tpu.memory_space<vmem>>, %arg9: memref<16x128xf32, #tpu.memory_space<vmem>>, %arg10: memref<4x16x128xbf16, #tpu.memory_space<vmem>>, %arg11: memref<16x256xf32, #tpu.memory_space<vmem>>) attributes {dimension_semantics = [#tpu.dimension_semantics<arbitrary>, #tpu.dimension_semantics<arbitrary>], iteration_bounds = array<i64: 2, 2>, scalar_prefetch = 0 : i64, scratch_operands = 2 : i64, tpu.core_type = #tpu.core_type<tc>, window_params = [{pipeline_mode = #tpu.pipeline_mode<synchronous>, transform_indices = @transform_0, window_bounds = array<i64: 16, 128>}, {pipeline_mode = #tpu.pipeline_mode<synchronous>, transform_indices = @transform_1, window_bounds = array<i64: 128, 256>}, {pipeline_mode = #tpu.pipeline_mode<synchronous>, transform_indices = @transform_2, window_bounds = array<i64: 1, 256>}, {transform_indices = @transform_3, window_bounds = array<i64: 1, 128, 256>}, {pipeline_mode = #tpu.pipeline_mode<synchronous>, transform_indices = @transform_4, window_bounds = array<i64: 2, 1, 256>}, {pipeline_mode = #tpu.pipeline_mode<synchronous>, transform_indices = @transform_5, window_bounds = array<i64: 256, 128>}, {pipeline_mode = #tpu.pipeline_mode<synchronous>, transform_indices = @transform_6, window_bounds = array<i64: 1, 128>}, {pipeline_mode = #tpu.pipeline_mode<synchronous>, transform_indices = @transform_7, window_bounds = array<i64: 16, 128>}]} {
    %c0_i32 = arith.constant 0 : i32
    %0 = arith.cmpi eq, %arg0, %c0_i32 : i32
    %c0_i32_0 = arith.constant 0 : i32
    %1 = arith.cmpi eq, %arg1, %c0_i32_0 : i32
    %2 = arith.andi %0, %1 : i1
    %3 = arith.extui %2 : i1 to i32
    %c0_i32_1 = arith.constant 0 : i32
    %4 = arith.cmpi ne, %3, %c0_i32_1 : i32
    scf.if %4 {
      %c0_19 = arith.constant 0 : index
      %c0_20 = arith.constant 0 : index
      %32 = vector.load %arg2[%c0_19, %c0_20] : memref<16x128xf32, #tpu.memory_space<vmem>>, vector<16x128xf32>
      %33 = arith.truncf %32 : vector<16x128xf32> to vector<16x128xbf16>
      %c0_21 = arith.constant 0 : index
      %c0_22 = arith.constant 0 : index
      %34 = vector.load %arg3[%c0_21, %c0_22] : memref<128x256xbf16, #tpu.memory_space<vmem>>, vector<128x256xbf16>
      %cst_23 = arith.constant dense<0.000000e+00> : vector<16x256xf32>
      %35 = tpu.matmul %33, %34, %cst_23 {dimension_numbers = #tpu.dot_dimension_numbers<[1], [0], [0], [1], [0, 0, 1, 1], [], []>} : vector<16x128xbf16>, vector<128x256xbf16>, vector<16x256xf32> -> vector<16x256xf32>
      %c0_24 = arith.constant 0 : index
      %c0_25 = arith.constant 0 : index
      %36 = vector.load %arg4[%c0_24, %c0_25] : memref<1x256xf32, #tpu.memory_space<vmem>>, vector<1x256xf32>
      %37 = vector.broadcast %36 : vector<1x256xf32> to vector<16x256xf32>
      %38 = arith.addf %35, %37 : vector<16x256xf32>
      %cst_26 = arith.constant 0.000000e+00 : f32
      %39 = vector.broadcast %cst_26 : f32 to vector<16x256xf32>
      %40 = arith.cmpf oge, %38, %39 : vector<16x256xf32>
      %cst_27 = arith.constant 0.00999999977 : f32
      %41 = vector.broadcast %cst_27 : f32 to vector<16x256xf32>
      %42 = arith.mulf %41, %38 : vector<16x256xf32>
      %43 = arith.select %40, %38, %42 : vector<16x256xi1>, vector<16x256xf32>
      %44 = arith.truncf %43 : vector<16x256xf32> to vector<16x256xbf16>
      %45 = vector.extract_strided_slice %44 {offsets = [0, 0], sizes = [16, 128], strides = [1, 1]} : vector<16x256xbf16> to vector<16x128xbf16>
      %c0_28 = arith.constant 0 : index
      %c0_29 = arith.constant 0 : index
      %c0_30 = arith.constant 0 : index
      %46 = vector.load %arg10[%c0_28, %c0_29, %c0_30] : memref<4x16x128xbf16, #tpu.memory_space<vmem>>, vector<1x16x128xbf16>
      %47 = vector.shape_cast %46 : vector<1x16x128xbf16> to vector<16x128xbf16>
      %48 = vector.shape_cast %45 : vector<16x128xbf16> to vector<1x16x128xbf16>
      tpu.vector_store %arg10[%c0_28, %c0_29, %c0_30], %48 {strides = array<i32>} : memref<4x16x128xbf16, #tpu.memory_space<vmem>>, vector<1x16x128xbf16>,
      %49 = vector.extract_strided_slice %44 {offsets = [0, 128], sizes = [16, 128], strides = [1, 1]} : vector<16x256xbf16> to vector<16x128xbf16>
      %c1 = arith.constant 1 : index
      %c0_31 = arith.constant 0 : index
      %c0_32 = arith.constant 0 : index
      %50 = vector.load %arg10[%c1, %c0_31, %c0_32] : memref<4x16x128xbf16, #tpu.memory_space<vmem>>, vector<1x16x128xbf16>
      %51 = vector.shape_cast %50 : vector<1x16x128xbf16> to vector<16x128xbf16>
      %52 = vector.shape_cast %49 : vector<16x128xbf16> to vector<1x16x128xbf16>
      tpu.vector_store %arg10[%c1, %c0_31, %c0_32], %52 {strides = array<i32>} : memref<4x16x128xbf16, #tpu.memory_space<vmem>>, vector<1x16x128xbf16>,
    } else {
    }
    %c0_i32_2 = arith.constant 0 : i32
    %5 = arith.cmpi eq, %arg1, %c0_i32_2 : i32
    %6 = arith.extui %5 : i1 to i32
    %c0_i32_3 = arith.constant 0 : i32
    %7 = arith.cmpi ne, %6, %c0_i32_3 : i32
    scf.if %7 {
      %cst_19 = arith.constant 0.000000e+00 : f32
      %32 = vector.broadcast %cst_19 : f32 to vector<16x256xf32>
      %c0_20 = arith.constant 0 : index
      %c0_21 = arith.constant 0 : index
      %33 = vector.load %arg11[%c0_20, %c0_21] : memref<16x256xf32, #tpu.memory_space<vmem>>, vector<16x256xf32>
      tpu.vector_store %arg11[%c0_20, %c0_21], %32 {strides = array<i32>} : memref<16x256xf32, #tpu.memory_space<vmem>>, vector<16x256xf32>,
    } else {
    }
    %c2_i32 = arith.constant 2 : i32
    %c0_i32_4 = arith.constant 0 : i32
    %8 = arith.cmpi eq, %c2_i32, %c0_i32_4 : i32
    %c1_i32 = arith.constant 1 : i32
    %9 = arith.select %8, %c1_i32, %c2_i32 : i32
    %10 = arith.remsi %arg0, %9 : i32
    %c0_i32_5 = arith.constant 0 : i32
    %11 = arith.cmpi ne, %10, %c0_i32_5 : i32
    %c0_i32_6 = arith.constant 0 : i32
    %12 = arith.cmpi slt, %10, %c0_i32_6 : i32
    %c0_i32_7 = arith.constant 0 : i32
    %13 = arith.cmpi slt, %9, %c0_i32_7 : i32
    %14 = arith.xori %12, %13 : i1
    %15 = arith.andi %14, %11 : i1
    %16 = arith.addi %10, %9 : i32
    %17 = arith.select %15, %16, %10 : i32
    %c2_i32_8 = arith.constant 2 : i32
    %18 = arith.muli %17, %c2_i32_8 : i32
    %19 = arith.addi %18, %arg1 : i32
    %20 = arith.index_cast %19 : i32 to index
    %c0 = arith.constant 0 : index
    %c0_9 = arith.constant 0 : index
    %21 = vector.load %arg10[%20, %c0, %c0_9] : memref<4x16x128xbf16, #tpu.memory_space<vmem>>, vector<1x16x128xbf16>
    %22 = vector.shape_cast %21 : vector<1x16x128xbf16> to vector<16x128xbf16>
    %c0_10 = arith.constant 0 : index
    %c0_11 = arith.constant 0 : index
    %23 = vector.load %arg11[%c0_10, %c0_11] : memref<16x256xf32, #tpu.memory_space<vmem>>, vector<16x256xf32>
    %c0_12 = arith.constant 0 : index
    %c0_13 = arith.constant 0 : index
    %c0_14 = arith.constant 0 : index
    %24 = vector.load %arg5[%c0_12, %c0_13, %c0_14] : memref<1x128x256xbf16, #tpu.memory_space<vmem>>, vector<1x128x256xbf16>
    %25 = vector.shape_cast %24 : vector<1x128x256xbf16> to vector<128x256xbf16>
    %cst = arith.constant dense<0.000000e+00> : vector<16x256xf32>
    %26 = tpu.matmul %22, %25, %cst {dimension_numbers = #tpu.dot_dimension_numbers<[1], [0], [0], [1], [0, 0, 1, 1], [], []>} : vector<16x128xbf16>, vector<128x256xbf16>, vector<16x256xf32> -> vector<16x256xf32>
    %27 = arith.addf %23, %26 : vector<16x256xf32>
    %c0_15 = arith.constant 0 : index
    %c0_16 = arith.constant 0 : index
    %28 = vector.load %arg11[%c0_15, %c0_16] : memref<16x256xf32, #tpu.memory_space<vmem>>, vector<16x256xf32>
    tpu.vector_store %arg11[%c0_15, %c0_16], %27 {strides = array<i32>} : memref<16x256xf32, #tpu.memory_space<vmem>>, vector<16x256xf32>,
    %c1_i32_17 = arith.constant 1 : i32
    %29 = arith.cmpi eq, %arg1, %c1_i32_17 : i32
    %30 = arith.extui %29 : i1 to i32
    %c0_i32_18 = arith.constant 0 : i32
    %31 = arith.cmpi ne, %30, %c0_i32_18 : i32
    scf.if %31 {
      %c0_19 = arith.constant 0 : index
      %c0_20 = arith.constant 0 : index
      %32 = vector.load %arg11[%c0_19, %c0_20] : memref<16x256xf32, #tpu.memory_space<vmem>>, vector<16x256xf32>
      %33 = arith.index_cast %arg0 : i32 to index
      %c0_21 = arith.constant 0 : index
      %c0_22 = arith.constant 0 : index
      %34 = vector.load %arg6[%33, %c0_21, %c0_22] : memref<2x1x256xf32, #tpu.memory_space<vmem>>, vector<1x1x256xf32>
      %35 = vector.shape_cast %34 : vector<1x1x256xf32> to vector<1x256xf32>
      %36 = vector.broadcast %35 : vector<1x256xf32> to vector<16x256xf32>
      %37 = arith.addf %32, %36 : vector<16x256xf32>
      %cst_23 = arith.constant 0.000000e+00 : f32
      %38 = vector.broadcast %cst_23 : f32 to vector<16x256xf32>
      %39 = arith.cmpf oge, %37, %38 : vector<16x256xf32>
      %cst_24 = arith.constant 0.00999999977 : f32
      %40 = vector.broadcast %cst_24 : f32 to vector<16x256xf32>
      %41 = arith.mulf %40, %37 : vector<16x256xf32>
      %42 = arith.select %39, %37, %41 : vector<16x256xi1>, vector<16x256xf32>
      %43 = arith.truncf %42 : vector<16x256xf32> to vector<16x256xbf16>
      %c1_i32_25 = arith.constant 1 : i32
      %44 = arith.cmpi slt, %arg0, %c1_i32_25 : i32
      %45 = arith.extui %44 : i1 to i32
      %c0_i32_26 = arith.constant 0 : i32
      %46 = arith.cmpi ne, %45, %c0_i32_26 : i32
      scf.if %46 {
        %c1_i32_29 = arith.constant 1 : i32
        %50 = arith.addi %arg0, %c1_i32_29 : i32
        %c2_i32_30 = arith.constant 2 : i32
        %c0_i32_31 = arith.constant 0 : i32
        %51 = arith.cmpi eq, %c2_i32_30, %c0_i32_31 : i32
        %c1_i32_32 = arith.constant 1 : i32
        %52 = arith.select %51, %c1_i32_32, %c2_i32_30 : i32
        %53 = arith.remsi %50, %52 : i32
        %c0_i32_33 = arith.constant 0 : i32
        %54 = arith.cmpi ne, %53, %c0_i32_33 : i32
        %c0_i32_34 = arith.constant 0 : i32
        %55 = arith.cmpi slt, %53, %c0_i32_34 : i32
        %c0_i32_35 = arith.constant 0 : i32
        %56 = arith.cmpi slt, %52, %c0_i32_35 : i32
        %57 = arith.xori %55, %56 : i1
        %58 = arith.andi %57, %54 : i1
        %59 = arith.addi %53, %52 : i32
        %60 = arith.select %58, %59, %53 : i32
        %c2_i32_36 = arith.constant 2 : i32
        %61 = arith.muli %60, %c2_i32_36 : i32
        %62 = vector.extract_strided_slice %43 {offsets = [0, 0], sizes = [16, 128], strides = [1, 1]} : vector<16x256xbf16> to vector<16x128xbf16>
        %c0_i32_37 = arith.constant 0 : i32
        %63 = arith.addi %61, %c0_i32_37 : i32
        %64 = arith.index_cast %63 : i32 to index
        %c0_38 = arith.constant 0 : index
        %c0_39 = arith.constant 0 : index
        %65 = vector.load %arg10[%64, %c0_38, %c0_39] : memref<4x16x128xbf16, #tpu.memory_space<vmem>>, vector<1x16x128xbf16>
        %66 = vector.shape_cast %65 : vector<1x16x128xbf16> to vector<16x128xbf16>
        %67 = vector.shape_cast %62 : vector<16x128xbf16> to vector<1x16x128xbf16>
        tpu.vector_store %arg10[%64, %c0_38, %c0_39], %67 {strides = array<i32>} : memref<4x16x128xbf16, #tpu.memory_space<vmem>>, vector<1x16x128xbf16>,
        %68 = vector.extract_strided_slice %43 {offsets = [0, 128], sizes = [16, 128], strides = [1, 1]} : vector<16x256xbf16> to vector<16x128xbf16>
        %c1_i32_40 = arith.constant 1 : i32
        %69 = arith.addi %61, %c1_i32_40 : i32
        %70 = arith.index_cast %69 : i32 to index
        %c0_41 = arith.constant 0 : index
        %c0_42 = arith.constant 0 : index
        %71 = vector.load %arg10[%70, %c0_41, %c0_42] : memref<4x16x128xbf16, #tpu.memory_space<vmem>>, vector<1x16x128xbf16>
        %72 = vector.shape_cast %71 : vector<1x16x128xbf16> to vector<16x128xbf16>
        %73 = vector.shape_cast %68 : vector<16x128xbf16> to vector<1x16x128xbf16>
        tpu.vector_store %arg10[%70, %c0_41, %c0_42], %73 {strides = array<i32>} : memref<4x16x128xbf16, #tpu.memory_space<vmem>>, vector<1x16x128xbf16>,
      } else {
      }
      %c1_i32_27 = arith.constant 1 : i32
      %47 = arith.cmpi eq, %arg0, %c1_i32_27 : i32
      %48 = arith.extui %47 : i1 to i32
      %c0_i32_28 = arith.constant 0 : i32
      %49 = arith.cmpi ne, %48, %c0_i32_28 : i32
      scf.if %49 {
        %c0_29 = arith.constant 0 : index
        %c0_30 = arith.constant 0 : index
        %50 = vector.load %arg7[%c0_29, %c0_30] : memref<256x128xbf16, #tpu.memory_space<vmem>>, vector<256x128xbf16>
        %cst_31 = arith.constant dense<0.000000e+00> : vector<16x128xf32>
        %51 = tpu.matmul %43, %50, %cst_31 {dimension_numbers = #tpu.dot_dimension_numbers<[1], [0], [0], [1], [0, 0, 1, 1], [], []>} : vector<16x256xbf16>, vector<256x128xbf16>, vector<16x128xf32> -> vector<16x128xf32>
        %c0_32 = arith.constant 0 : index
        %c0_33 = arith.constant 0 : index
        %52 = vector.load %arg8[%c0_32, %c0_33] : memref<1x128xf32, #tpu.memory_space<vmem>>, vector<1x128xf32>
        %53 = vector.broadcast %52 : vector<1x128xf32> to vector<16x128xf32>
        %54 = arith.addf %51, %53 : vector<16x128xf32>
        %c0_34 = arith.constant 0 : index
        %c0_35 = arith.constant 0 : index
        %55 = vector.load %arg9[%c0_34, %c0_35] : memref<16x128xf32, #tpu.memory_space<vmem>>, vector<16x128xf32>
        tpu.vector_store %arg9[%c0_34, %c0_35], %54 {strides = array<i32>} : memref<16x128xf32, #tpu.memory_space<vmem>>, vector<16x128xf32>,
      } else {
      }
    } else {
    }
    return
  }
  func.func @transform_0(%arg0: i32, %arg1: i32) -> (i32, i32) {
    %c0_i32 = arith.constant 0 : i32
    %c0_i32_0 = arith.constant 0 : i32
    %c0_i32_1 = arith.constant 0 : i32
    return %c0_i32, %c0_i32_0 : i32, i32
  }
  func.func @transform_1(%arg0: i32, %arg1: i32) -> (i32, i32) {
    %c0_i32 = arith.constant 0 : i32
    %c0_i32_0 = arith.constant 0 : i32
    %c0_i32_1 = arith.constant 0 : i32
    return %c0_i32, %c0_i32_0 : i32, i32
  }
  func.func @transform_2(%arg0: i32, %arg1: i32) -> (i32, i32) {
    %c0_i32 = arith.constant 0 : i32
    %c0_i32_0 = arith.constant 0 : i32
    %c0_i32_1 = arith.constant 0 : i32
    return %c0_i32, %c0_i32_0 : i32, i32
  }
  func.func @transform_3(%arg0: i32, %arg1: i32) -> (i32, i32, i32) {
    %c0_i32 = arith.constant 0 : i32
    %c0_i32_0 = arith.constant 0 : i32
    return %arg0, %arg1, %c0_i32 : i32, i32, i32
  }
  func.func @transform_4(%arg0: i32, %arg1: i32) -> (i32, i32, i32) {
    %c0_i32 = arith.constant 0 : i32
    %c0_i32_0 = arith.constant 0 : i32
    %c0_i32_1 = arith.constant 0 : i32
    %c0_i32_2 = arith.constant 0 : i32
    return %c0_i32, %c0_i32_0, %c0_i32_1 : i32, i32, i32
  }
  func.func @transform_5(%arg0: i32, %arg1: i32) -> (i32, i32) {
    %c0_i32 = arith.constant 0 : i32
    %c0_i32_0 = arith.constant 0 : i32
    %c0_i32_1 = arith.constant 0 : i32
    return %c0_i32, %c0_i32_0 : i32, i32
  }
  func.func @transform_6(%arg0: i32, %arg1: i32) -> (i32, i32) {
    %c0_i32 = arith.constant 0 : i32
    %c0_i32_0 = arith.constant 0 : i32
    %c0_i32_1 = arith.constant 0 : i32
    return %c0_i32, %c0_i32_0 : i32, i32
  }
  func.func @transform_7(%arg0: i32, %arg1: i32) -> (i32, i32) {
    %c0_i32 = arith.constant 0 : i32
    %c0_i32_0 = arith.constant 0 : i32
    %c0_i32_1 = arith.constant 0 : i32
    return %c0_i32, %c0_i32_0 : i32, i32
  }
}

</mosaic_0001>

<llo_original>
// kernel: classifier_forward.1
$region0: #{classifier_forward.1}
  #allocation0 [shape = 'u32[]', space=smem, size = 0x4, offset = 0x4, fixed_abs, tag = 'smem constant byte address 0x4 - core index']
  #allocation1 [shape = 'u32[72,128]{1,0:T(1,128)}', space=vmem, size = 0x9000, scoped, tag = 'internal scratch']
  #allocation2 [shape = 'bf16[4,16,128]{2,1,0:T(8,128)(2,1)}', space=vmem, size = 0x4000, scoped, tag = 'scratch operand']
  #allocation3 [shape = 'f32[16,256]{1,0:T(8,128)}', space=vmem, size = 0x4000, scoped, tag = 'scratch operand']
  %s0 = inlined_call_operand.vmem [shape: f32[16,128], index: 0, kind: input, shape index: {}]
  %s1 = inlined_call_operand.hbm [shape: bf16[128,256], index: 1, kind: input, shape index: {}]
  %s2 = inlined_call_operand.vmem [shape: f32[1,256], index: 2, kind: input, shape index: {}]
  %s3 = inlined_call_operand.hbm [shape: bf16[2,256,256], index: 3, kind: input, shape index: {}]
  %s4 = inlined_call_operand.vmem [shape: f32[2,1,256], index: 4, kind: input, shape index: {}]
  %s5 = inlined_call_operand.hbm [shape: bf16[256,128], index: 5, kind: input, shape index: {}]
  %s6 = inlined_call_operand.vmem [shape: f32[1,128], index: 6, kind: input, shape index: {}]
  %s7 = inlined_call_operand.vmem [shape: f32[16,128], index: 7, kind: output, shape index: {}]
  %s8 = sld [smem:[#allocation0]]
  $region93: #{classifier_forward.1} parent=0
    _
  %s10 = ssub.s32 1, %s8
  %s11 = scalar_select 0, %s10, %s8
  $region1: #{classifier_forward.1} parent=0
    #allocation4 [shape = 'u8[65536]{0}', space=vmem, size = 0x10000, scoped, tag = 'input window, operand 1, single buffered']
    #allocation5 [shape = 's32[2]{0}', space=sflag, size = 0x8, scoped, tag = 'scoped memory for classifier_forward.1']
    #allocation6 [shape = 'u8[131072]{0}', space=vmem, size = 0x20000, scoped, tag = 'input window, operand 3']
    #allocation7 [shape = 's32[2]{0}', space=sflag, size = 0x8, scoped, tag = 'scoped memory for classifier_forward.1']
    #allocation8 [shape = 'u8[65536]{0}', space=vmem, size = 0x10000, scoped, tag = 'input window, operand 5, single buffered']
    %12 = vsyncpa [#allocation5], 0
    %13 = vsyncpa [#allocation7], 0
    %s14 = scalar_lea.sflag [#allocation7], 1
    %15 = vsyncpa %s14, 0
    loop: start=0, step=1, limit=6
    $region2: #{classifier_forward.1} parent=1 // loop_pre_header
      _
    $region3: #{classifier_forward.1} parent=1 // loop_header
      %s17 = sphi 0, %s21
      %p18 = scmp.ge.s32.totalorder %s17, 6
      %s24 = sphi 0, %s36
      %s25 = sphi 0, %s32
      %s26 = sphi 0, %s24
      %s27 = sphi 0, %s25
      %s28 = sphi 0, %s26
      %s29 = sphi 0, %s27
      %s37 = sphi 0, %s37
      %s39 = sphi 0, %s37
      %s40 = sphi 0, %s39
      %s54 = sphi 0, %s40
      %s58 = sphi 0, %s58
      %s60 = sphi 0, %s58
      %s61 = sphi 0, %s60
      %s75 = sphi 0, %s61
      %s79 = sphi 0, %s79
      %s81 = sphi 0, %s79
      %s82 = sphi 0, %s81
      %s96 = sphi 0, %s82
      %s104 = sphi 0, %s106
      %s107 = sphi 0, %s104
      %s108 = sphi 0, %s107
      %s124 = sphi 0, %s108
      %s128 = sphi 0, %s128
      %s130 = sphi 0, %s128
      %s131 = sphi 0, %s130
      %s145 = sphi 0, %s131
      %s149 = sphi 0, %s149
      %s151 = sphi 0, %s149
      %s152 = sphi 0, %s151
      %s166 = sphi 0, %s152
      %s170 = sphi 0, %s170
      %s172 = sphi 0, %s170
      %s173 = sphi 0, %s172
      %s187 = sphi 0, %s173
      %s191 = sphi 0, %s191
      %s193 = sphi 0, %s191
      %s194 = sphi 0, %s193
      %s208 = sphi 0, %s194
    $region4: #{classifier_forward.1} parent=1 // loop_header_branch
      %20 = sbr.rel (%p18) target = $region8
    $region5: #{classifier_forward.1} parent=1 // loop_body
      %s22 = ssub.s32 %s17, 1
      %s23 = ssub.s32 %s17, 2
      %s30 = sadd.s32 1, %s25
      %p31 = scmp.ge.s32.totalorder %s30, 2
      %s32 = scalar_select %p31, 0, %s30
      %s33 = sadd.s32 1, %s24
      %s34 = scalar_select %p31, %s33, %s24
      %p35 = scmp.ge.s32.totalorder %s34, 2
      %s36 = scalar_select %p35, 0, %s34
      %s38 = sadd.s32 %s37, 1
      %p41 = scmp.eq.s32.totalorder %s17, 3
      %p42 = scmp.ne.s32.totalorder %s37, %s39
      %p43 = scmp.eq.s32.totalorder %s17, 0
      %p44 = por %p42, %p43
      %p45 = scmp.ne.s32.totalorder %s37, %s39
      %p46 = scmp.eq.s32.totalorder %s22, 3
      %p47 = por %p45, %p46
      %p48 = scmp.ne.s32.totalorder %s39, %s40
      %p49 = scmp.eq.s32.totalorder %s22, 0
      %p50 = por %p48, %p49
      %p51 = scmp.ne.s32.totalorder %s39, %s40
      %p52 = scmp.eq.s32.totalorder %s23, 3
      %p53 = por %p51, %p52
      %p55 = scmp.ne.s32.totalorder %s40, %s54
      %p56 = scmp.eq.s32.totalorder %s23, 0
      %p57 = por %p55, %p56
      %s59 = sadd.s32 %s58, 1
      %p62 = scmp.eq.s32.totalorder %s17, 3
      %p63 = scmp.ne.s32.totalorder %s58, %s60
      %p64 = scmp.eq.s32.totalorder %s17, 0
      %p65 = por %p63, %p64
      %p66 = scmp.ne.s32.totalorder %s58, %s60
      %p67 = scmp.eq.s32.totalorder %s22, 3
      %p68 = por %p66, %p67
      %p69 = scmp.ne.s32.totalorder %s60, %s61
      %p70 = scmp.eq.s32.totalorder %s22, 0
      %p71 = por %p69, %p70
      %p72 = scmp.ne.s32.totalorder %s60, %s61
      %p73 = scmp.eq.s32.totalorder %s23, 3
      %p74 = por %p72, %p73
      %p76 = scmp.ne.s32.totalorder %s61, %s75
      %p77 = scmp.eq.s32.totalorder %s23, 0
      %p78 = por %p76, %p77
      %s80 = sadd.s32 %s79, 1
      %p83 = scmp.eq.s32.totalorder %s17, 3
      %p84 = scmp.ne.s32.totalorder %s79, %s81
      %p85 = scmp.eq.s32.totalorder %s17, 0
      %p86 = por %p84, %p85
      %p87 = scmp.ne.s32.totalorder %s79, %s81
      %p88 = scmp.eq.s32.totalorder %s22, 3
      %p89 = por %p87, %p88
      %p90 = scmp.ne.s32.totalorder %s81, %s82
      %p91 = scmp.eq.s32.totalorder %s22, 0
      %p92 = por %p90, %p91
      %p93 = scmp.ne.s32.totalorder %s81, %s82
      %p94 = scmp.eq.s32.totalorder %s23, 3
      %p95 = por %p93, %p94
      %p97 = scmp.ne.s32.totalorder %s82, %s96
      %p98 = scmp.eq.s32.totalorder %s23, 0
      %p99 = por %p97, %p98
      %s100 = ssub.s32 %s24, %s36
      %s101 = ssub.s32 %s25, %s32
      %s102 = sor.u32 %s100, %s101
      %p103 = scmp.eq.s32.totalorder %s102, 0
      %s105 = sadd.s32 %s104, 1
      %s106 = scalar_select %p103, %s104, %s105
      %p109 = pneg %p103
      %p110 = scmp.eq.s32.totalorder %s17, 3
      %p111 = por %p109, %p110
      %p112 = scmp.ne.s32.totalorder %s104, %s107
      %p113 = scmp.eq.s32.totalorder %s17, 0
      %p114 = por %p112, %p113
      %p115 = scmp.ne.s32.totalorder %s104, %s107
      %p116 = scmp.eq.s32.totalorder %s22, 3
      %p117 = por %p115, %p116
      %p118 = scmp.ne.s32.totalorder %s107, %s108
      %p119 = scmp.eq.s32.totalorder %s22, 0
      %p120 = por %p118, %p119
      %p121 = scmp.ne.s32.totalorder %s107, %s108
      %p122 = scmp.eq.s32.totalorder %s23, 3
      %p123 = por %p121, %p122
      %p125 = scmp.ne.s32.totalorder %s108, %s124
      %p126 = scmp.eq.s32.totalorder %s23, 0
      %p127 = por %p125, %p126
      %s129 = sadd.s32 %s128, 1
      %p132 = scmp.eq.s32.totalorder %s17, 3
      %p133 = scmp.ne.s32.totalorder %s128, %s130
      %p134 = scmp.eq.s32.totalorder %s17, 0
      %p135 = por %p133, %p134
      %p136 = scmp.ne.s32.totalorder %s128, %s130
      %p137 = scmp.eq.s32.totalorder %s22, 3
      %p138 = por %p136, %p137
      %p139 = scmp.ne.s32.totalorder %s130, %s131
      %p140 = scmp.eq.s32.totalorder %s22, 0
      %p141 = por %p139, %p140
      %p142 = scmp.ne.s32.totalorder %s130, %s131
      %p143 = scmp.eq.s32.totalorder %s23, 3
      %p144 = por %p142, %p143
      %p146 = scmp.ne.s32.totalorder %s131, %s145
      %p147 = scmp.eq.s32.totalorder %s23, 0
      %p148 = por %p146, %p147
      %s150 = sadd.s32 %s149, 1
      %p153 = scmp.eq.s32.totalorder %s17, 3
      %p154 = scmp.ne.s32.totalorder %s149, %s151
      %p155 = scmp.eq.s32.totalorder %s17, 0
      %p156 = por %p154, %p155
      %p157 = scmp.ne.s32.totalorder %s149, %s151
      %p158 = scmp.eq.s32.totalorder %s22, 3
      %p159 = por %p157, %p158
      %p160 = scmp.ne.s32.totalorder %s151, %s152
      %p161 = scmp.eq.s32.totalorder %s22, 0
      %p162 = por %p160, %p161
      %p163 = scmp.ne.s32.totalorder %s151, %s152
      %p164 = scmp.eq.s32.totalorder %s23, 3
      %p165 = por %p163, %p164
      %p167 = scmp.ne.s32.totalorder %s152, %s166
      %p168 = scmp.eq.s32.totalorder %s23, 0
      %p169 = por %p167, %p168
      %s171 = sadd.s32 %s170, 1
      %p174 = scmp.eq.s32.totalorder %s17, 3
      %p175 = scmp.ne.s32.totalorder %s170, %s172
      %p176 = scmp.eq.s32.totalorder %s17, 0
      %p177 = por %p175, %p176
      %p178 = scmp.ne.s32.totalorder %s170, %s172
      %p179 = scmp.eq.s32.totalorder %s22, 3
      %p180 = por %p178, %p179
      %p181 = scmp.ne.s32.totalorder %s172, %s173
      %p182 = scmp.eq.s32.totalorder %s22, 0
      %p183 = por %p181, %p182
      %p184 = scmp.ne.s32.totalorder %s172, %s173
      %p185 = scmp.eq.s32.totalorder %s23, 3
      %p186 = por %p184, %p185
      %p188 = scmp.ne.s32.totalorder %s173, %s187
      %p189 = scmp.eq.s32.totalorder %s23, 0
      %p190 = por %p188, %p189
      %s192 = sadd.s32 %s191, 1
      %p195 = scmp.eq.s32.totalorder %s17, 3
      %p196 = scmp.ne.s32.totalorder %s191, %s193
      %p197 = scmp.eq.s32.totalorder %s17, 0
      %p198 = por %p196, %p197
      %p199 = scmp.ne.s32.totalorder %s191, %s193
      %p200 = scmp.eq.s32.totalorder %s22, 3
      %p201 = por %p199, %p200
      %p202 = scmp.ne.s32.totalorder %s193, %s194
      %p203 = scmp.eq.s32.totalorder %s22, 0
      %p204 = por %p202, %p203
      %p205 = scmp.ne.s32.totalorder %s193, %s194
      %p206 = scmp.eq.s32.totalorder %s23, 3
      %p207 = por %p205, %p206
      %p209 = scmp.ne.s32.totalorder %s194, %s208
      %p210 = scmp.eq.s32.totalorder %s23, 0
      %p211 = por %p209, %p210
      %p212 = scmp.le.s32.totalorder 1, %s17
      %p213 = scmp.lt.s32.totalorder %s17, 5
      %p214 = pnand %p212, %p213
      %p215 = pneg %p214
      // Predicated region
      $region9: #{classifier_forward.1} parent=5 // pred_check
        _
      $region10: #{classifier_forward.1} parent=5 // pred_check_branch
        %217 = sbr.rel (%p214) target = $region12
      $region11: #{classifier_forward.1} parent=5 // pred_region
        %s218 = ssub.s32 %s17, 1
        // Predicated region
        $region13: #{classifier_forward.1} parent=11 // pred_check
          %p219 = pneg %p50
        $region14: #{classifier_forward.1} parent=11 // pred_check_branch
          %221 = sbr.rel (%p219) target = $region16
        $region15: #{classifier_forward.1} parent=11 // pred_region
          _
        $region16: #{classifier_forward.1} parent=11 // pred_fallthru
          _
        // Predicated region
        $region17: #{classifier_forward.1} parent=11 // pred_check
          %p222 = pneg %p71
        $region18: #{classifier_forward.1} parent=11 // pred_check_branch
          %224 = sbr.rel (%p222) target = $region20
        $region19: #{classifier_forward.1} parent=11 // pred_region
          %226 = vsyncadd [#allocation5], 0
          %s227 = sshll.u32 %s1, 4
          %s228 = int_to_ptr.hbm [resolvable:$true] %s227
          %s229 = sshll.u32 [#allocation4], 4
          %s230 = int_to_ptr.vmem [resolvable:$true] %s229
          %235 = dma.hbm_to_vmem [thread:$0]  %s228, 2048, %s230, [#allocation5], 128, 128, 8
        $region20: #{classifier_forward.1} parent=11 // pred_fallthru
          _
        // Predicated region
        $region21: #{classifier_forward.1} parent=11 // pred_check
          %p236 = pneg %p92
        $region22: #{classifier_forward.1} parent=11 // pred_check_branch
          %238 = sbr.rel (%p236) target = $region24
        $region23: #{classifier_forward.1} parent=11 // pred_region
          _
        $region24: #{classifier_forward.1} parent=11 // pred_fallthru
          _
        // Predicated region
        $region25: #{classifier_forward.1} parent=11 // pred_check
          %p239 = pneg %p141
        $region26: #{classifier_forward.1} parent=11 // pred_check_branch
          %241 = sbr.rel (%p239) target = $region28
        $region27: #{classifier_forward.1} parent=11 // pred_region
          _
        $region28: #{classifier_forward.1} parent=11 // pred_fallthru
          _
        // Predicated region
        $region29: #{classifier_forward.1} parent=11 // pred_check
          %p242 = pneg %p162
        $region30: #{classifier_forward.1} parent=11 // pred_check_branch
          %244 = sbr.rel (%p242) target = $region32
        $region31: #{classifier_forward.1} parent=11 // pred_region
          %246 = vsyncadd [#allocation7], 0
          %s247 = sshll.u32 %s5, 4
          %s248 = int_to_ptr.hbm [resolvable:$true] %s247
          %s249 = sshll.u32 [#allocation8], 4
          %s250 = int_to_ptr.vmem [resolvable:$true] %s249
          %255 = dma.hbm_to_vmem [thread:$0]  %s248, 2048, %s250, [#allocation7], 64, 64, 4
        $region32: #{classifier_forward.1} parent=11 // pred_fallthru
          _
        // Predicated region
        $region33: #{classifier_forward.1} parent=11 // pred_check
          %p256 = pneg %p183
        $region34: #{classifier_forward.1} parent=11 // pred_check_branch
          %258 = sbr.rel (%p256) target = $region36
        $region35: #{classifier_forward.1} parent=11 // pred_region
          _
        $region36: #{classifier_forward.1} parent=11 // pred_fallthru
          _
      $region12: #{classifier_forward.1} parent=5 // pred_fallthru
        _
      %p259 = scmp.lt.s32.totalorder %s17, 4
      // Predicated region
      $region37: #{classifier_forward.1} parent=5 // pred_check
        %p260 = pneg %p259
      $region38: #{classifier_forward.1} parent=5 // pred_check_branch
        %262 = sbr.rel (%p260) target = $region40
      $region39: #{classifier_forward.1} parent=5 // pred_region
        // Predicated region
        $region41: #{classifier_forward.1} parent=39 // pred_check
          %p263 = pneg %p114
        $region42: #{classifier_forward.1} parent=39 // pred_check_branch
          %265 = sbr.rel (%p263) target = $region44
        $region43: #{classifier_forward.1} parent=39 // pred_region
          %s266 = sand.u32 %s17, 1
          %s267 = scalar_lea.sflag [#allocation7], %s266
          %s268 = sand.u32 %s104, 1
          %s269 = smul.addr %s268, 128
          %s270 = scalar_lea.vmem [#allocation6], %s269
          %s271 = smul.u32 16, %s25
          %273 = vsyncadd %s267, 0
          %s274 = smul.addr %s271, 2
          %s275 = smul.addr %s24, 64
          %s276 = sadd.s32 %s274, %s275
          %s277 = smul.addr %s276, 4
          %s278 = scalar_lea.hbm %s3, %s277
          %s279 = sshll.u32 %s278, 4
          %s280 = int_to_ptr.hbm [resolvable:$true] %s279
          %s281 = sshll.u32 %s270, 4
          %s282 = int_to_ptr.vmem [resolvable:$true] %s281
          %287 = dma.hbm_to_vmem [thread:$0]  %s280, 2048, %s282, %s267, 128, 128, 8
        $region44: #{classifier_forward.1} parent=39 // pred_fallthru
          _
      $region40: #{classifier_forward.1} parent=5 // pred_fallthru
        _
      %p288 = scmp.le.s32.totalorder 1, %s17
      %p289 = scmp.lt.s32.totalorder %s17, 5
      %p290 = pnand %p288, %p289
      %p291 = pneg %p290
      // Predicated region
      $region45: #{classifier_forward.1} parent=5 // pred_check
        _
      $region46: #{classifier_forward.1} parent=5 // pred_check_branch
        %293 = sbr.rel (%p290) target = $region48
      $region47: #{classifier_forward.1} parent=5 // pred_region
        %s294 = ssub.s32 %s17, 1
        // Predicated region
        $region49: #{classifier_forward.1} parent=47 // pred_check
          %p295 = pneg %p71
        $region50: #{classifier_forward.1} parent=47 // pred_check_branch
          %297 = sbr.rel (%p295) target = $region52
        $region51: #{classifier_forward.1} parent=47 // pred_region
          %299 = dma.done [#allocation5], 2048
        $region52: #{classifier_forward.1} parent=47 // pred_fallthru
          _
        %s300 = sand.u32 %s22, 1
        %s301 = scalar_lea.sflag [#allocation7], %s300
        %s302 = sand.u32 %s107, 1
        %s303 = smul.addr %s302, 128
        %s304 = scalar_lea.vmem [#allocation6], %s303
        // Predicated region
        $region53: #{classifier_forward.1} parent=47 // pred_check
          %p305 = pneg %p120
        $region54: #{classifier_forward.1} parent=47 // pred_check_branch
          %307 = sbr.rel (%p305) target = $region56
        $region55: #{classifier_forward.1} parent=47 // pred_region
          %309 = dma.done %s301, 2048
        $region56: #{classifier_forward.1} parent=47 // pred_fallthru
          _
        // Predicated region
        $region57: #{classifier_forward.1} parent=47 // pred_check
          %p310 = pneg %p162
        $region58: #{classifier_forward.1} parent=47 // pred_check_branch
          %312 = sbr.rel (%p310) target = $region60
        $region59: #{classifier_forward.1} parent=47 // pred_region
          %314 = dma.done [#allocation7], 2048
        $region60: #{classifier_forward.1} parent=47 // pred_fallthru
          _
        %p315 = pneg %p50
        %p316 = pneg %p47
        %p317 = pneg %p71
        %p318 = pneg %p68
        %p319 = pneg %p92
        %p320 = pneg %p89
        %s321 = sand.u32 %s22, 1
        %s322 = scalar_lea.sflag [#allocation7], %s321
        %s323 = sand.u32 %s107, 1
        %s324 = smul.addr %s323, 128
        %s325 = scalar_lea.vmem [#allocation6], %s324
        %p326 = pneg %p120
        %p327 = pneg %p117
        %p328 = pneg %p141
        %p329 = pneg %p138
        %p330 = pneg %p162
        %p331 = pneg %p159
        %p332 = pneg %p183
        %p333 = pneg %p180
        %p334 = pneg %p204
        %p335 = pneg %p201
        %s336 = smul.u32 16, %s27
        %p337 = scmp.eq.s32.totalorder %s26, 0
        %p338 = scmp.eq.s32.totalorder %s27, 0
        %p339 = pnand %p337, %p338
        %p340 = pneg %p339
        // Predicated region
        $region61: #{classifier_forward.1} parent=47 // pred_check
          _
        $region62: #{classifier_forward.1} parent=47 // pred_check_branch
          %342 = sbr.rel (%p339) target = $region64
        $region63: #{classifier_forward.1} parent=47 // pred_region
          %v343 = vld [vmem:[%s0] sm:$0xff]
          %v344 = vld [vmem:[%s0 + $0x8] sm:$0xff]
          %v345 = vpack.c.bf16 %v344, %v343
          %v346 = vld [vmem:[#allocation4] sm:$0xff]
          %v347 = vld [vmem:[#allocation4 + $0x8] sm:$0xff]
          %v348 = vld [vmem:[#allocation4 + $0x10] sm:$0xff]
          %v349 = vld [vmem:[#allocation4 + $0x18] sm:$0xff]
          %v350 = vld [vmem:[#allocation4 + $0x20] sm:$0xff]
          %v351 = vld [vmem:[#allocation4 + $0x28] sm:$0xff]
          %v352 = vld [vmem:[#allocation4 + $0x30] sm:$0xff]
          %v353 = vld [vmem:[#allocation4 + $0x38] sm:$0xff]
          %v354 = vld [vmem:[#allocation4 + $0x40] sm:$0xff]
          %v355 = vld [vmem:[#allocation4 + $0x48] sm:$0xff]
          %v356 = vld [vmem:[#allocation4 + $0x50] sm:$0xff]
          %v357 = vld [vmem:[#allocation4 + $0x58] sm:$0xff]
          %v358 = vld [vmem:[#allocation4 + $0x60] sm:$0xff]
          %v359 = vld [vmem:[#allocation4 + $0x68] sm:$0xff]
          %v360 = vld [vmem:[#allocation4 + $0x70] sm:$0xff]
          %v361 = vld [vmem:[#allocation4 + $0x78] sm:$0xff]
          %v362 = vld [vmem:[%s2] sm:$0x3]
          %v364 = vperm.slane %v362, 0
          %v365 = vperm.slane %v362, 1
          %v384 = vunpack.c.l.b16 %v346
          %v385 = vunpack.c.h.b16 %v346
          %v386 = vunpack.c.l.b16 %v347
          %v387 = vunpack.c.h.b16 %v347
          %v388 = vunpack.c.l.b16 %v348
          %v389 = vunpack.c.h.b16 %v348
          %v390 = vunpack.c.l.b16 %v349
          %v391 = vunpack.c.h.b16 %v349
          %v392 = vunpack.c.l.b16 %v350
          %v393 = vunpack.c.h.b16 %v350
          %v394 = vunpack.c.l.b16 %v351
          %v395 = vunpack.c.h.b16 %v351
          %v396 = vunpack.c.l.b16 %v352
          %v397 = vunpack.c.h.b16 %v352
          %v398 = vunpack.c.l.b16 %v353
          %v399 = vunpack.c.h.b16 %v353
          %v400 = vunpack.c.l.b16 %v354
          %v401 = vunpack.c.h.b16 %v354
          %v402 = vunpack.c.l.b16 %v355
          %v403 = vunpack.c.h.b16 %v355
          %v404 = vunpack.c.l.b16 %v356
          %v405 = vunpack.c.h.b16 %v356
          %v406 = vunpack.c.l.b16 %v357
          %v407 = vunpack.c.h.b16 %v357
          %v408 = vunpack.c.l.b16 %v358
          %v409 = vunpack.c.h.b16 %v358
          %v410 = vunpack.c.l.b16 %v359
          %v411 = vunpack.c.h.b16 %v359
          %v412 = vunpack.c.l.b16 %v360
          %v413 = vunpack.c.h.b16 %v360
          %v414 = vunpack.c.l.b16 %v361
          %v415 = vunpack.c.h.b16 %v361
          %v416 = vpack.c.b16 %v386, %v384
          %v417 = vpack.c.b16 %v387, %v385
          %v418 = vpack.c.b16 %v390, %v388
          %v419 = vpack.c.b16 %v391, %v389
          %v420 = vpack.c.b16 %v394, %v392
          %v421 = vpack.c.b16 %v395, %v393
          %v422 = vpack.c.b16 %v398, %v396
          %v423 = vpack.c.b16 %v399, %v397
          %v424 = vpack.c.b16 %v402, %v400
          %v425 = vpack.c.b16 %v403, %v401
          %v426 = vpack.c.b16 %v406, %v404
          %v427 = vpack.c.b16 %v407, %v405
          %v428 = vpack.c.b16 %v410, %v408
          %v429 = vpack.c.b16 %v411, %v409
          %v430 = vpack.c.b16 %v414, %v412
          %v431 = vpack.c.b16 %v415, %v413
          %448 = vmatpush.bf16.msra.mxu0 %v430
          %449 = vmatpush.bf16.msra.mxu0 %v428
          %450 = vmatpush.bf16.msra.mxu0 %v426
          %451 = vmatpush.bf16.msra.mxu0 %v424
          %452 = vmatpush.bf16.msra.mxu0 %v422
          %453 = vmatpush.bf16.msra.mxu0 %v420
          %454 = vmatpush.bf16.msra.mxu0 %v418
          %455 = vmatpush.bf16.msra.mxu0 %v416
          %456 = vmatmul.bf16.gmra.mxu0 %v345
          %v457 = vpop.f32.mrf.mxu0
          %v458 = vadd.f32 %v364, %v457
          %v459 = vpop.f32.mrf.mxu0
          %v460 = vadd.f32 %v364, %v459
          %461 = vdwg.mxu0
          %462 = vmatpush.bf16.msra.mxu0 %v431
          %463 = vmatpush.bf16.msra.mxu0 %v429
          %464 = vmatpush.bf16.msra.mxu0 %v427
          %465 = vmatpush.bf16.msra.mxu0 %v425
          %466 = vmatpush.bf16.msra.mxu0 %v423
          %467 = vmatpush.bf16.msra.mxu0 %v421
          %468 = vmatpush.bf16.msra.mxu0 %v419
          %469 = vmatpush.bf16.msra.mxu0 %v417
          %470 = vmatmul.bf16.gmra.mxu0 %v345
          %v471 = vpop.f32.mrf.mxu0
          %v472 = vadd.f32 %v365, %v471
          %v473 = vpop.f32.mrf.mxu0
          %v474 = vadd.f32 %v365, %v473
          %475 = vdwg.mxu0
          %vm476 = vcmp.ge.f32.partialorder %v458, 0.0
          %vm477 = vcmp.ge.f32.partialorder %v472, 0.0
          %vm478 = vcmp.ge.f32.partialorder %v460, 0.0
          %vm479 = vcmp.ge.f32.partialorder %v474, 0.0
          %v480 = vmul.f32 %v458, 0.01
          %v481 = vmul.f32 %v472, 0.01
          %v482 = vmul.f32 %v460, 0.01
          %v483 = vmul.f32 %v474, 0.01
          %v484 = vsel %vm476, %v458, %v480
          %v485 = vsel %vm477, %v472, %v481
          %v486 = vsel %vm478, %v460, %v482
          %v487 = vsel %vm479, %v474, %v483
          %v488 = vpack.c.bf16 %v485, %v484
          %v489 = vpack.c.bf16 %v487, %v486
          %490 = vst [vmem:[#allocation2] sm:$0xf] %v488
          %491 = vst [vmem:[#allocation2 + $0x4] sm:$0xf] %v489
          %v494 = vrot.slane %v488, 4
          %v495 = vrot.slane %v489, 4
          %s498 = scalar_lea.vmem [#allocation2], 8
          %499 = vst [vmem:[%s498] sm:$0xf] %v494
          %500 = vst [vmem:[%s498 + $0x4] sm:$0xf] %v495
        $region64: #{classifier_forward.1} parent=47 // pred_fallthru
          _
        // Predicated region
        $region65: #{classifier_forward.1} parent=47 // pred_check
          %p501 = pneg %p338
        $region66: #{classifier_forward.1} parent=47 // pred_check_branch
          %503 = sbr.rel (%p501) target = $region68
        $region67: #{classifier_forward.1} parent=47 // pred_region
          %504 = vst [vmem:[#allocation3] sm:$0xff] 0.0
          %505 = vst [vmem:[#allocation3 + $0x8] sm:$0xff] 0.0
          %506 = vst [vmem:[#allocation3 + $0x10] sm:$0xff] 0.0
          %507 = vst [vmem:[#allocation3 + $0x18] sm:$0xff] 0.0
        $region68: #{classifier_forward.1} parent=47 // pred_fallthru
          _
        %p508 = scmp.lt.s32.totalorder %s26, 0
        %s509 = ssub.s32 0, %s26
        %s510 = scalar_select %p508, %s509, %s26
        %s511 = sand.u32 %s510, 1
        %s512 = ssub.s32 0, %s511
        %s513 = scalar_select %p508, %s512, %s511
        %p514 = scmp.ne.s32.totalorder %s513, 0
        %p515 = scmp.lt.s32.totalorder %s513, 0
        %p516 = pnand %p515, %p514
        %p517 = pneg %p516
        %s518 = sadd.s32 %s513, 2
        %s519 = scalar_select %p517, %s518, %s513
        %s520 = smul.u32 %s519, 2
        %s521 = sadd.s32 %s520, %s27
        %s522 = smul.u32 %s521, 2
        %s523 = smul.addr %s522, 4
        %s524 = scalar_lea.vmem [#allocation2], %s523
        %v525 = vld [vmem:[%s524] sm:$0xf]
        %v526 = vld [vmem:[%s524 + $0x4] sm:$0xf]
        %v527 = vld [vmem:[#allocation3] sm:$0xff]
        %v528 = vld [vmem:[#allocation3 + $0x8] sm:$0xff]
        %v529 = vld [vmem:[#allocation3 + $0x10] sm:$0xff]
        %v530 = vld [vmem:[#allocation3 + $0x18] sm:$0xff]
        %v531 = vld [vmem:[%s304] sm:$0xff]
        %v532 = vld [vmem:[%s304 + $0x8] sm:$0xff]
        %v533 = vld [vmem:[%s304 + $0x10] sm:$0xff]
        %v534 = vld [vmem:[%s304 + $0x18] sm:$0xff]
        %v535 = vld [vmem:[%s304 + $0x20] sm:$0xff]
        %v536 = vld [vmem:[%s304 + $0x28] sm:$0xff]
        %v537 = vld [vmem:[%s304 + $0x30] sm:$0xff]
        %v538 = vld [vmem:[%s304 + $0x38] sm:$0xff]
        %v539 = vld [vmem:[%s304 + $0x40] sm:$0xff]
        %v540 = vld [vmem:[%s304 + $0x48] sm:$0xff]
        %v541 = vld [vmem:[%s304 + $0x50] sm:$0xff]
        %v542 = vld [vmem:[%s304 + $0x58] sm:$0xff]
        %v543 = vld [vmem:[%s304 + $0x60] sm:$0xff]
        %v544 = vld [vmem:[%s304 + $0x68] sm:$0xff]
        %v545 = vld [vmem:[%s304 + $0x70] sm:$0xff]
        %v546 = vld [vmem:[%s304 + $0x78] sm:$0xff]
        %v549 = vunpack.c.l.b16 %v525
        %v550 = vunpack.c.l.b16 %v526
        %v551 = vpack.c.b16 %v550, %v549
        %v569 = vunpack.c.l.b16 %v531
        %v570 = vunpack.c.h.b16 %v531
        %v571 = vunpack.c.l.b16 %v532
        %v572 = vunpack.c.h.b16 %v532
        %v573 = vunpack.c.l.b16 %v533
        %v574 = vunpack.c.h.b16 %v533
        %v575 = vunpack.c.l.b16 %v534
        %v576 = vunpack.c.h.b16 %v534
        %v577 = vunpack.c.l.b16 %v535
        %v578 = vunpack.c.h.b16 %v535
        %v579 = vunpack.c.l.b16 %v536
        %v580 = vunpack.c.h.b16 %v536
        %v581 = vunpack.c.l.b16 %v537
        %v582 = vunpack.c.h.b16 %v537
        %v583 = vunpack.c.l.b16 %v538
        %v584 = vunpack.c.h.b16 %v538
        %v585 = vunpack.c.l.b16 %v539
        %v586 = vunpack.c.h.b16 %v539
        %v587 = vunpack.c.l.b16 %v540
        %v588 = vunpack.c.h.b16 %v540
        %v589 = vunpack.c.l.b16 %v541
        %v590 = vunpack.c.h.b16 %v541
        %v591 = vunpack.c.l.b16 %v542
        %v592 = vunpack.c.h.b16 %v542
        %v593 = vunpack.c.l.b16 %v543
        %v594 = vunpack.c.h.b16 %v543
        %v595 = vunpack.c.l.b16 %v544
        %v596 = vunpack.c.h.b16 %v544
        %v597 = vunpack.c.l.b16 %v545
        %v598 = vunpack.c.h.b16 %v545
        %v599 = vunpack.c.l.b16 %v546
        %v600 = vunpack.c.h.b16 %v546
        %v601 = vpack.c.b16 %v571, %v569
        %v602 = vpack.c.b16 %v572, %v570
        %v603 = vpack.c.b16 %v575, %v573
        %v604 = vpack.c.b16 %v576, %v574
        %v605 = vpack.c.b16 %v579, %v577
        %v606 = vpack.c.b16 %v580, %v578
        %v607 = vpack.c.b16 %v583, %v581
        %v608 = vpack.c.b16 %v584, %v582
        %v609 = vpack.c.b16 %v587, %v585
        %v610 = vpack.c.b16 %v588, %v586
        %v611 = vpack.c.b16 %v591, %v589
        %v612 = vpack.c.b16 %v592, %v590
        %v613 = vpack.c.b16 %v595, %v593
        %v614 = vpack.c.b16 %v596, %v594
        %v615 = vpack.c.b16 %v599, %v597
        %v616 = vpack.c.b16 %v600, %v598
        %633 = vmatpush.bf16.msra.mxu0 %v615
        %634 = vmatpush.bf16.msra.mxu0 %v613
        %635 = vmatpush.bf16.msra.mxu0 %v611
        %636 = vmatpush.bf16.msra.mxu0 %v609
        %637 = vmatpush.bf16.msra.mxu0 %v607
        %638 = vmatpush.bf16.msra.mxu0 %v605
        %639 = vmatpush.bf16.msra.mxu0 %v603
        %640 = vmatpush.bf16.msra.mxu0 %v601
        %641 = vmatmul.bf16.gmra.mxu0 %v551
        %v642 = vpop.f32.mrf.mxu0
        %v643 = vadd.f32 0.0, %v642
        %v644 = vpop.f32.mrf.mxu0
        %v645 = vadd.f32 0.0, %v644
        %646 = vdwg.mxu0
        %647 = vmatpush.bf16.msra.mxu0 %v616
        %648 = vmatpush.bf16.msra.mxu0 %v614
        %649 = vmatpush.bf16.msra.mxu0 %v612
        %650 = vmatpush.bf16.msra.mxu0 %v610
        %651 = vmatpush.bf16.msra.mxu0 %v608
        %652 = vmatpush.bf16.msra.mxu0 %v606
        %653 = vmatpush.bf16.msra.mxu0 %v604
        %654 = vmatpush.bf16.msra.mxu0 %v602
        %655 = vmatmul.bf16.gmra.mxu0 %v551
        %v656 = vpop.f32.mrf.mxu0
        %v657 = vadd.f32 0.0, %v656
        %v658 = vpop.f32.mrf.mxu0
        %v659 = vadd.f32 0.0, %v658
        %660 = vdwg.mxu0
        %v661 = vadd.f32 %v527, %v643
        %v662 = vadd.f32 %v528, %v657
        %v663 = vadd.f32 %v529, %v645
        %v664 = vadd.f32 %v530, %v659
        %665 = vst [vmem:[#allocation3] sm:$0xff] %v661
        %666 = vst [vmem:[#allocation3 + $0x8] sm:$0xff] %v662
        %667 = vst [vmem:[#allocation3 + $0x10] sm:$0xff] %v663
        %668 = vst [vmem:[#allocation3 + $0x18] sm:$0xff] %v664
        %p669 = scmp.eq.s32.totalorder %s27, 1
        // Predicated region
        $region69: #{classifier_forward.1} parent=47 // pred_check
          %p670 = pneg %p669
        $region70: #{classifier_forward.1} parent=47 // pred_check_branch
          %672 = sbr.rel (%p670) target = $region72
        $region71: #{classifier_forward.1} parent=47 // pred_region
          %v673 = vld [vmem:[#allocation3] sm:$0xff]
          %v674 = vld [vmem:[#allocation3 + $0x8] sm:$0xff]
          %v675 = vld [vmem:[#allocation3 + $0x10] sm:$0xff]
          %v676 = vld [vmem:[#allocation3 + $0x18] sm:$0xff]
          %s677 = smul.u32 %s26, 2
          %s678 = scalar_lea.vmem %s4, %s677
          %v679 = vld [vmem:[%s678] sm:$0x3]
          %v681 = vperm.slane %v679, 0
          %v682 = vperm.slane %v679, 1
          %v685 = vadd.f32 %v673, %v681
          %v686 = vadd.f32 %v674, %v682
          %v687 = vadd.f32 %v675, %v681
          %v688 = vadd.f32 %v676, %v682
          %vm689 = vcmp.ge.f32.partialorder %v685, 0.0
          %vm690 = vcmp.ge.f32.partialorder %v686, 0.0
          %vm691 = vcmp.ge.f32.partialorder %v687, 0.0
          %vm692 = vcmp.ge.f32.partialorder %v688, 0.0
          %v693 = vmul.f32 %v685, 0.01
          %v694 = vmul.f32 %v686, 0.01
          %v695 = vmul.f32 %v687, 0.01
          %v696 = vmul.f32 %v688, 0.01
          %v697 = vsel %vm689, %v685, %v693
          %v698 = vsel %vm690, %v686, %v694
          %v699 = vsel %vm691, %v687, %v695
          %v700 = vsel %vm692, %v688, %v696
          %v701 = vpack.c.bf16 %v698, %v697
          %v702 = vpack.c.bf16 %v700, %v699
          %p703 = scmp.lt.s32.totalorder %s26, 1
          // Predicated region
          $region73: #{classifier_forward.1} parent=71 // pred_check
            %p704 = pneg %p703
          $region74: #{classifier_forward.1} parent=71 // pred_check_branch
            %706 = sbr.rel (%p704) target = $region76
          $region75: #{classifier_forward.1} parent=71 // pred_region
            %s707 = sadd.s32 %s26, 1
            %p708 = scmp.lt.s32.totalorder %s707, 0
            %s709 = ssub.s32 0, %s707
            %s710 = scalar_select %p708, %s709, %s707
            %s711 = sand.u32 %s710, 1
            %s712 = ssub.s32 0, %s711
            %s713 = scalar_select %p708, %s712, %s711
            %p714 = scmp.ne.s32.totalorder %s713, 0
            %p715 = scmp.lt.s32.totalorder %s713, 0
            %p716 = pnand %p715, %p714
            %p717 = pneg %p716
            %s718 = sadd.s32 %s713, 2
            %s719 = scalar_select %p717, %s718, %s713
            %s720 = smul.u32 %s719, 2
            %s721 = smul.u32 %s720, 2
            %s722 = smul.addr %s721, 4
            %s723 = scalar_lea.vmem [#allocation2], %s722
            %724 = vst [vmem:[%s723] sm:$0xf] %v701
            %725 = vst [vmem:[%s723 + $0x4] sm:$0xf] %v702
            %s726 = sadd.s32 %s720, 1
            %v729 = vrot.slane %v701, 4
            %v730 = vrot.slane %v702, 4
            %s733 = smul.u32 %s726, 2
            %s734 = smul.addr %s733, 4
            %s735 = scalar_lea.vmem [#allocation2], %s734
            %736 = vst [vmem:[%s735] sm:$0xf] %v729
            %737 = vst [vmem:[%s735 + $0x4] sm:$0xf] %v730
          $region76: #{classifier_forward.1} parent=71 // pred_fallthru
            _
          %p738 = scmp.eq.s32.totalorder %s26, 1
          // Predicated region
          $region77: #{classifier_forward.1} parent=71 // pred_check
            %p739 = pneg %p738
          $region78: #{classifier_forward.1} parent=71 // pred_check_branch
            %741 = sbr.rel (%p739) target = $region80
          $region79: #{classifier_forward.1} parent=71 // pred_region
            %v742 = vld [vmem:[#allocation8] sm:$0xf]
            %v743 = vld [vmem:[#allocation8 + $0x4] sm:$0xf]
            %v744 = vld [vmem:[#allocation8 + $0x8] sm:$0xf]
            %v745 = vld [vmem:[#allocation8 + $0xc] sm:$0xf]
            %v746 = vld [vmem:[#allocation8 + $0x10] sm:$0xf]
            %v747 = vld [vmem:[#allocation8 + $0x14] sm:$0xf]
            %v748 = vld [vmem:[#allocation8 + $0x18] sm:$0xf]
            %v749 = vld [vmem:[#allocation8 + $0x1c] sm:$0xf]
            %v750 = vld [vmem:[#allocation8 + $0x20] sm:$0xf]
            %v751 = vld [vmem:[#allocation8 + $0x24] sm:$0xf]
            %v752 = vld [vmem:[#allocation8 + $0x28] sm:$0xf]
            %v753 = vld [vmem:[#allocation8 + $0x2c] sm:$0xf]
            %v754 = vld [vmem:[#allocation8 + $0x30] sm:$0xf]
            %v755 = vld [vmem:[#allocation8 + $0x34] sm:$0xf]
            %v756 = vld [vmem:[#allocation8 + $0x38] sm:$0xf]
            %v757 = vld [vmem:[#allocation8 + $0x3c] sm:$0xf]
            %v758 = vld [vmem:[#allocation8 + $0x40] sm:$0xf]
            %v759 = vld [vmem:[#allocation8 + $0x44] sm:$0xf]
            %v760 = vld [vmem:[#allocation8 + $0x48] sm:$0xf]
            %v761 = vld [vmem:[#allocation8 + $0x4c] sm:$0xf]
            %v762 = vld [vmem:[#allocation8 + $0x50] sm:$0xf]
            %v763 = vld [vmem:[#allocation8 + $0x54] sm:$0xf]
            %v764 = vld [vmem:[#allocation8 + $0x58] sm:$0xf]
            %v765 = vld [vmem:[#allocation8 + $0x5c] sm:$0xf]
            %v766 = vld [vmem:[#allocation8 + $0x60] sm:$0xf]
            %v767 = vld [vmem:[#allocation8 + $0x64] sm:$0xf]
            %v768 = vld [vmem:[#allocation8 + $0x68] sm:$0xf]
            %v769 = vld [vmem:[#allocation8 + $0x6c] sm:$0xf]
            %v770 = vld [vmem:[#allocation8 + $0x70] sm:$0xf]
            %v771 = vld [vmem:[#allocation8 + $0x74] sm:$0xf]
            %v772 = vld [vmem:[#allocation8 + $0x78] sm:$0xf]
            %v773 = vld [vmem:[#allocation8 + $0x7c] sm:$0xf]
            %v774 = vld [vmem:[%s6] sm:$0x1]
            %v776 = vperm.slane %v774, 0
            %v780 = vunpack.c.l.b16 %v701
            %v781 = vunpack.c.h.b16 %v701
            %v782 = vunpack.c.l.b16 %v702
            %v783 = vunpack.c.h.b16 %v702
            %v784 = vpack.c.b16 %v782, %v780
            %v785 = vpack.c.b16 %v783, %v781
            %v820 = vunpack.c.l.b16 %v742
            %v821 = vunpack.c.l.b16 %v743
            %v822 = vunpack.c.l.b16 %v744
            %v823 = vunpack.c.l.b16 %v745
            %v824 = vunpack.c.l.b16 %v746
            %v825 = vunpack.c.l.b16 %v747
            %v826 = vunpack.c.l.b16 %v748
            %v827 = vunpack.c.l.b16 %v749
            %v828 = vunpack.c.l.b16 %v750
            %v829 = vunpack.c.l.b16 %v751
            %v830 = vunpack.c.l.b16 %v752
            %v831 = vunpack.c.l.b16 %v753
            %v832 = vunpack.c.l.b16 %v754
            %v833 = vunpack.c.l.b16 %v755
            %v834 = vunpack.c.l.b16 %v756
            %v835 = vunpack.c.l.b16 %v757
            %v836 = vunpack.c.l.b16 %v758
            %v837 = vunpack.c.l.b16 %v759
            %v838 = vunpack.c.l.b16 %v760
            %v839 = vunpack.c.l.b16 %v761
            %v840 = vunpack.c.l.b16 %v762
            %v841 = vunpack.c.l.b16 %v763
            %v842 = vunpack.c.l.b16 %v764
            %v843 = vunpack.c.l.b16 %v765
            %v844 = vunpack.c.l.b16 %v766
            %v845 = vunpack.c.l.b16 %v767
            %v846 = vunpack.c.l.b16 %v768
            %v847 = vunpack.c.l.b16 %v769
            %v848 = vunpack.c.l.b16 %v770
            %v849 = vunpack.c.l.b16 %v771
            %v850 = vunpack.c.l.b16 %v772
            %v851 = vunpack.c.l.b16 %v773
            %v852 = vpack.c.b16 %v821, %v820
            %v853 = vpack.c.b16 %v823, %v822
            %v854 = vpack.c.b16 %v825, %v824
            %v855 = vpack.c.b16 %v827, %v826
            %v856 = vpack.c.b16 %v829, %v828
            %v857 = vpack.c.b16 %v831, %v830
            %v858 = vpack.c.b16 %v833, %v832
            %v859 = vpack.c.b16 %v835, %v834
            %v860 = vpack.c.b16 %v837, %v836
            %v861 = vpack.c.b16 %v839, %v838
            %v862 = vpack.c.b16 %v841, %v840
            %v863 = vpack.c.b16 %v843, %v842
            %v864 = vpack.c.b16 %v845, %v844
            %v865 = vpack.c.b16 %v847, %v846
            %v866 = vpack.c.b16 %v849, %v848
            %v867 = vpack.c.b16 %v851, %v850
            %884 = vmatpush.bf16.msra.mxu0 %v859
            %885 = vmatpush.bf16.msra.mxu0 %v858
            %886 = vmatpush.bf16.msra.mxu0 %v857
            %887 = vmatpush.bf16.msra.mxu0 %v856
            %888 = vmatpush.bf16.msra.mxu0 %v855
            %889 = vmatpush.bf16.msra.mxu0 %v854
            %890 = vmatpush.bf16.msra.mxu0 %v853
            %891 = vmatpush.bf16.msra.mxu0 %v852
            %892 = vmatmul.bf16.gmra.mxu0 %v784
            %v893 = vpop.f32.mrf.mxu0
            %v894 = vadd.f32 %v776, %v893
            %v895 = vpop.f32.mrf.mxu0
            %v896 = vadd.f32 %v776, %v895
            %897 = vdwg.mxu0
            %898 = vmatpush.bf16.msra.mxu0 %v867
            %899 = vmatpush.bf16.msra.mxu0 %v866
            %900 = vmatpush.bf16.msra.mxu0 %v865
            %901 = vmatpush.bf16.msra.mxu0 %v864
            %902 = vmatpush.bf16.msra.mxu0 %v863
            %903 = vmatpush.bf16.msra.mxu0 %v862
            %904 = vmatpush.bf16.msra.mxu0 %v861
            %905 = vmatpush.bf16.msra.mxu0 %v860
            %906 = vmatmul.bf16.gmra.mxu0 %v785
            %v907 = vpop.f32.mrf.mxu0
            %v908 = vadd.f32 %v894, %v907
            %v909 = vpop.f32.mrf.mxu0
            %v910 = vadd.f32 %v896, %v909
            %911 = vdwg.mxu0
            %912 = vst [vmem:[%s7] sm:$0xff] %v908
            %913 = vst [vmem:[%s7 + $0x8] sm:$0xff] %v910
          $region80: #{classifier_forward.1} parent=71 // pred_fallthru
            _
        $region72: #{classifier_forward.1} parent=47 // pred_fallthru
          _
        // Predicated region
        $region81: #{classifier_forward.1} parent=47 // pred_check
          %p914 = pneg %p201
        $region82: #{classifier_forward.1} parent=47 // pred_check_branch
          %916 = sbr.rel (%p914) target = $region84
        $region83: #{classifier_forward.1} parent=47 // pred_region
          _
        $region84: #{classifier_forward.1} parent=47 // pred_fallthru
          _
        // Predicated region
        $region85: #{classifier_forward.1} parent=47 // pred_check
          %p917 = pneg %p201
        $region86: #{classifier_forward.1} parent=47 // pred_check_branch
          %919 = sbr.rel (%p917) target = $region88
        $region87: #{classifier_forward.1} parent=47 // pred_region
          _
        $region88: #{classifier_forward.1} parent=47 // pred_fallthru
          _
      $region48: #{classifier_forward.1} parent=5 // pred_fallthru
        _
      %p920 = scmp.le.s32.totalorder 2, %s17
      // Predicated region
      $region89: #{classifier_forward.1} parent=5 // pred_check
        %p921 = pneg %p920
      $region90: #{classifier_forward.1} parent=5 // pred_check_branch
        %923 = sbr.rel (%p921) target = $region92
      $region91: #{classifier_forward.1} parent=5 // pred_region
        %s924 = ssub.s32 %s17, 2
      $region92: #{classifier_forward.1} parent=5 // pred_fallthru
        _
    $region6: #{classifier_forward.1} parent=1 // loop_footer
      %s21 = sadd.s32 1, %s17
    $region7: #{classifier_forward.1} parent=1 // loop_footer_branch
      %16 = sbr.rel target = $region3
    $region8: #{classifier_forward.1} parent=1 // loop_exit
      _
    %925 = vsyncpa [#allocation5], 1
    %s926 = scalar_lea.sflag [#allocation5], 1
    %927 = vsyncpa %s926, 1
    %928 = vsyncpa [#allocation7], 1
    %s929 = scalar_lea.sflag [#allocation7], 1
    %930 = vsyncpa %s929, 1

</llo_original>
